<compile_context>
chip_gen: v7x
topology: tpu7x:2x2x1
jax: 0.10.0
libtpu: 0.0.40
codegen_flags: <defaults>
</compile_context>

<pallas_src>
import jax
import jax.numpy as jnp
from jax import lax
from jax.experimental import pallas as pl
from jax.experimental.pallas import tpu as pltpu


# --------------------------------------------------------------------------
# Path 1: small-vocab fast path — tables resident in VMEM, one-hot MXU gather.
# --------------------------------------------------------------------------
def mfnet_onehot_kernel(uid_ref, iid_ref,      # VMEM: (1, B_TILE) int32 ids
                        uemb_ref, iemb_ref,    # VMEM: (U, D), (I, D) f32 (full tables)
                        wu_ref, wi_ref,        # VMEM: (1, D) f32 halves of Linear weight
                        b_ref,                 # SMEM: (1,) f32 Linear bias
                        out_ref):              # VMEM: (1, B_TILE) f32 (lane-dense)
    b_tile = out_ref.shape[1]
    U = uemb_ref.shape[0]
    I = iemb_ref.shape[0]

    # Per-table score vectors: scores_u[u] = <user_emb[u], w_u>  -> (1, U)/(1, I).
    nt = (((1,), (1,)), ((), ()))  # contract last dims (rhs-transposed matmul)
    scores_u = lax.dot_general(wu_ref[...], uemb_ref[...], nt,
                               preferred_element_type=jnp.float32)      # (1, U)
    scores_i = lax.dot_general(wi_ref[...], iemb_ref[...], nt,
                               preferred_element_type=jnp.float32)      # (1, I)

    # Transposed one-hot masks (vocab on sublanes, batch on lanes): no relayouts.
    onehot_uT = (lax.broadcasted_iota(jnp.int32, (U, b_tile), 0)
                 == uid_ref[...]).astype(jnp.float32)                   # (U, B_TILE)
    onehot_iT = (lax.broadcasted_iota(jnp.int32, (I, b_tile), 0)
                 == iid_ref[...]).astype(jnp.float32)                   # (I, B_TILE)

    # Gather + Linear fused: logit[b] = scores_u[uid[b]] + scores_i[iid[b]] + b.
    logit = (jnp.dot(scores_u, onehot_uT, preferred_element_type=jnp.float32)
             + jnp.dot(scores_i, onehot_iT, preferred_element_type=jnp.float32)
             + b_ref[0])                                                # (1, B_TILE)
    out_ref[...] = jax.nn.sigmoid(logit)                                # EUP


# --------------------------------------------------------------------------
# Path 2: general path — tables in HBM, per-row async-DMA gather.
# --------------------------------------------------------------------------
def mfnet_dma_kernel(uid_ref, iid_ref,        # SMEM scalar-prefetch: (B_pad,) int32
                     uemb_hbm, iemb_hbm,      # HBM (pl.ANY): (U, D), (I, D) f32
                     wu_ref, wi_ref,          # VMEM: (1, D) f32 halves of Linear weight
                     b_ref,                   # SMEM: (1,) f32 Linear bias
                     out_ref,                 # VMEM: (1, B_TILE) f32 (lane-dense)
                     ubuf, ibuf,              # VMEM scratch: (B_TILE, D) f32
                     sems):                   # DMA semaphores: (2, B_TILE)
    b_tile = out_ref.shape[1]
    base = pl.program_id(0) * b_tile

    # ---- Row gather: issue all HBM->VMEM row DMAs, then wait for all. ----
    @pl.loop(0, b_tile)
    def _issue(b):
        uid = uid_ref[base + b]
        iid = iid_ref[base + b]
        pltpu.make_async_copy(uemb_hbm.at[pl.ds(uid, 1), :],
                              ubuf.at[pl.ds(b, 1), :],
                              sems.at[0, b]).start()
        pltpu.make_async_copy(iemb_hbm.at[pl.ds(iid, 1), :],
                              ibuf.at[pl.ds(b, 1), :],
                              sems.at[1, b]).start()

    @pl.loop(0, b_tile)
    def _wait(b):
        # Same-shaped descriptor; .wait() only blocks on the semaphore count.
        pltpu.make_async_copy(uemb_hbm.at[pl.ds(0, 1), :],
                              ubuf.at[pl.ds(b, 1), :],
                              sems.at[0, b]).wait()
        pltpu.make_async_copy(iemb_hbm.at[pl.ds(0, 1), :],
                              ibuf.at[pl.ds(b, 1), :],
                              sems.at[1, b]).wait()

    # ---- Fused Linear(2D -> 1) + sigmoid (VPU mul-add, one XLU reduce). ----
    x = ubuf[...] * wu_ref[...] + ibuf[...] * wi_ref[...]       # (B_TILE, D)
    logit = jnp.sum(x, axis=-1) + b_ref[0]                      # (B_TILE,)
    out_ref[...] = jax.nn.sigmoid(logit).reshape(1, b_tile)     # lane-dense store


# --------------------------------------------------------------------------
# Wrapper
# --------------------------------------------------------------------------
def mfnet_forward(user_id, item_id, user_emb, item_emb, W, b, *,
                  b_tile=None, path="auto"):
    """JAX wrapper. W: (1, 2D) Linear weight, b: (1,) Linear bias."""
    B = user_id.shape[0]
    U, D = user_emb.shape
    I = item_emb.shape[0]

    # Clamp ids: in-kernel gathers have no bounds check.
    user_id = jnp.clip(user_id.astype(jnp.int32), 0, U - 1)
    item_id = jnp.clip(item_id.astype(jnp.int32), 0, I - 1)

    # Lane-friendly batch tile; pad B up to a multiple of it.
    if b_tile is None:
        b_tile = min(128, max(8, pl.next_power_of_2(B)))
    n_tiles = pl.cdiv(B, b_tile)
    B_pad = n_tiles * b_tile
    if B_pad != B:
        pad = B_pad - B
        user_id = jnp.pad(user_id, (0, pad))    # padded rows computed, discarded
        item_id = jnp.pad(item_id, (0, pad))

    # Split the (1, 2D) Linear weight into its user/item halves (glue, in JAX).
    w_u = W[:, :D]
    w_i = W[:, D:]

    if path == "auto":
        table_bytes = (U + I) * D * 4
        onehot_bytes = (U + I) * b_tile * 4
        small = (max(U, I) <= 4096) and (table_bytes + onehot_bytes <= 8 * 1024 * 1024)
        path = "onehot" if small else "dma"

    if path == "onehot":
        out = pl.pallas_call(
            mfnet_onehot_kernel,
            out_shape=jax.ShapeDtypeStruct((1, B_pad), jnp.float32),
            grid_spec=pltpu.PrefetchScalarGridSpec(
                num_scalar_prefetch=0,
                grid=(n_tiles,),
                in_specs=[
                    pl.BlockSpec((1, b_tile), lambda i: (0, i)),         # uid (VMEM)
                    pl.BlockSpec((1, b_tile), lambda i: (0, i)),         # iid (VMEM)
                    pl.BlockSpec((U, D), lambda i: (0, 0)),              # user table (resident)
                    pl.BlockSpec((I, D), lambda i: (0, 0)),              # item table (resident)
                    pl.BlockSpec((1, D), lambda i: (0, 0)),              # w_u
                    pl.BlockSpec((1, D), lambda i: (0, 0)),              # w_i
                    pl.BlockSpec(memory_space=pltpu.MemorySpace.SMEM),   # bias
                ],
                out_specs=pl.BlockSpec((1, b_tile), lambda i: (0, i)),
            ),
            compiler_params=pltpu.CompilerParams(
                dimension_semantics=("parallel",),
                vmem_limit_bytes=32 * 1024 * 1024,
            ),
        )(user_id.reshape(1, B_pad), item_id.reshape(1, B_pad),
          user_emb, item_emb, w_u, w_i, b)
    else:
        out = pl.pallas_call(
            mfnet_dma_kernel,
            out_shape=jax.ShapeDtypeStruct((1, B_pad), jnp.float32),
            grid_spec=pltpu.PrefetchScalarGridSpec(
                num_scalar_prefetch=2,                 # user_id, item_id -> SMEM
                grid=(n_tiles,),
                in_specs=[
                    pl.BlockSpec(memory_space=pl.ANY),                   # user table (HBM)
                    pl.BlockSpec(memory_space=pl.ANY),                   # item table (HBM)
                    pl.BlockSpec((1, D), lambda i, uid, iid: (0, 0)),    # w_u (VMEM)
                    pl.BlockSpec((1, D), lambda i, uid, iid: (0, 0)),    # w_i (VMEM)
                    pl.BlockSpec(memory_space=pltpu.MemorySpace.SMEM),   # bias
                ],
                out_specs=pl.BlockSpec((1, b_tile), lambda i, uid, iid: (0, i)),
                scratch_shapes=[
                    pltpu.VMEM((b_tile, D), jnp.float32),   # gathered user rows
                    pltpu.VMEM((b_tile, D), jnp.float32),   # gathered item rows
                    pltpu.SemaphoreType.DMA((2, b_tile)),   # one sem per row DMA
                ],
            ),
            compiler_params=pltpu.CompilerParams(
                dimension_semantics=("parallel",),
                vmem_limit_bytes=32 * 1024 * 1024,
            ),
        )(user_id, item_id, user_emb, item_emb, w_u, w_i, b)

    # Drop batch padding; torch.squeeze(..., dim=-1) equivalent.
    return out[0, :B]


def mfnet_reference(user_id, item_id, user_emb, item_emb, W, b):
    """Pure-JAX reference of the PyTorch forward for validation."""
    user = jnp.take(user_emb, user_id, axis=0)
    item = jnp.take(item_emb, item_id, axis=0)
    x = jnp.concatenate([user, item], axis=-1)        # (B, 2D)
    logits = x @ W.T + b                              # (B, 1)
    return jnp.squeeze(jax.nn.sigmoid(logits), axis=-1)


if __name__ == "__main__":
    user_num, item_num, latent_dim = 64, 96, 32

    key = jax.random.PRNGKey(0)
    k_u, k_i, k_w, k_b = jax.random.split(key, 4)

    # nn.Embedding default init: N(0, 1)
    user_emb = jax.random.normal(k_u, (user_num, latent_dim), jnp.float32)
    item_emb = jax.random.normal(k_i, (item_num, latent_dim), jnp.float32)

    # nn.Linear(2D, 1) default init: U(-1/sqrt(2D), 1/sqrt(2D))
    bound = 1.0 / jnp.sqrt(2.0 * latent_dim)
    W = jax.random.uniform(k_w, (1, 2 * latent_dim), jnp.float32, -bound, bound)
    b = jax.random.uniform(k_b, (1,), jnp.float32, -bound, bound)

    # Cover: single-tile (B=8) and padded multi-tile (B=200) on both paths.
    for batch in (8, 200):
        kb = jax.random.fold_in(key, batch)
        k_uid, k_iid = jax.random.split(kb)
        user_id = jax.random.randint(k_uid, (batch,), 0, user_num, jnp.int32)
        item_id = jax.random.randint(k_iid, (batch,), 0, item_num, jnp.int32)

        ref = mfnet_reference(user_id, item_id, user_emb, item_emb, W, b)

        for path in ("onehot", "dma"):
            out = mfnet_forward(user_id, item_id, user_emb, item_emb, W, b,
                                path=path)
            out = jax.block_until_ready(out)
            assert out.shape == (batch,), (path, out.shape, batch)
            assert jnp.allclose(out, ref, atol=1e-5, rtol=1e-5), (path, out, ref)

    print("KERNEL_OK")
</pallas_src>

<mosaic_0001>
module attributes {stable_mosaic.version = 11 : i64} {
  func.func @mfnet_onehot_kernel(%arg0: i32, %arg1: memref<1x8xi32, #tpu.memory_space<vmem>>, %arg2: memref<1x8xi32, #tpu.memory_space<vmem>>, %arg3: memref<64x32xf32, #tpu.memory_space<vmem>>, %arg4: memref<96x32xf32, #tpu.memory_space<vmem>>, %arg5: memref<1x32xf32, #tpu.memory_space<vmem>>, %arg6: memref<1x32xf32, #tpu.memory_space<vmem>>, %arg7: memref<1xf32, #tpu.memory_space<smem>>, %arg8: memref<1x8xf32, #tpu.memory_space<vmem>>) attributes {dimension_semantics = [#tpu.dimension_semantics<parallel>], iteration_bounds = array<i64: 1>, scalar_prefetch = 0 : i64, scratch_operands = 0 : i64, tpu.core_type = #tpu.core_type<tc>, window_params = [{transform_indices = @transform_0, window_bounds = array<i64: 1, 8>}, {transform_indices = @transform_1, window_bounds = array<i64: 1, 8>}, {pipeline_mode = #tpu.pipeline_mode<synchronous>, transform_indices = @transform_2, window_bounds = array<i64: 64, 32>}, {pipeline_mode = #tpu.pipeline_mode<synchronous>, transform_indices = @transform_3, window_bounds = array<i64: 96, 32>}, {pipeline_mode = #tpu.pipeline_mode<synchronous>, transform_indices = @transform_4, window_bounds = array<i64: 1, 32>}, {pipeline_mode = #tpu.pipeline_mode<synchronous>, transform_indices = @transform_5, window_bounds = array<i64: 1, 32>}, {transform_indices = @transform_6, window_bounds = array<i64: 1>}, {transform_indices = @transform_7, window_bounds = array<i64: 1, 8>}]} {
    %c0 = arith.constant 0 : index
    %c0_0 = arith.constant 0 : index
    %0 = vector.load %arg5[%c0, %c0_0] : memref<1x32xf32, #tpu.memory_space<vmem>>, vector<1x32xf32>
    %c0_1 = arith.constant 0 : index
    %c0_2 = arith.constant 0 : index
    %1 = vector.load %arg3[%c0_1, %c0_2] : memref<64x32xf32, #tpu.memory_space<vmem>>, vector<64x32xf32>
    %cst = arith.constant dense<0.000000e+00> : vector<1x64xf32>
    %2 = tpu.matmul %0, %1, %cst {dimension_numbers = #tpu.dot_dimension_numbers<[1], [1], [0], [0], [0, 0, 1, 0], [], []>} : vector<1x32xf32>, vector<64x32xf32>, vector<1x64xf32> -> vector<1x64xf32>
    %c0_3 = arith.constant 0 : index
    %c0_4 = arith.constant 0 : index
    %3 = vector.load %arg6[%c0_3, %c0_4] : memref<1x32xf32, #tpu.memory_space<vmem>>, vector<1x32xf32>
    %c0_5 = arith.constant 0 : index
    %c0_6 = arith.constant 0 : index
    %4 = vector.load %arg4[%c0_5, %c0_6] : memref<96x32xf32, #tpu.memory_space<vmem>>, vector<96x32xf32>
    %cst_7 = arith.constant dense<0.000000e+00> : vector<1x96xf32>
    %5 = tpu.matmul %3, %4, %cst_7 {dimension_numbers = #tpu.dot_dimension_numbers<[1], [1], [0], [0], [0, 0, 1, 0], [], []>} : vector<1x32xf32>, vector<96x32xf32>, vector<1x96xf32> -> vector<1x96xf32>
    %6 = tpu.iota {dimensions = array<i32: 0>} : vector<64x8xi32>
    %c0_8 = arith.constant 0 : index
    %c0_9 = arith.constant 0 : index
    %7 = vector.load %arg1[%c0_8, %c0_9] : memref<1x8xi32, #tpu.memory_space<vmem>>, vector<1x8xi32>
    %8 = vector.broadcast %7 : vector<1x8xi32> to vector<64x8xi32>
    %9 = arith.cmpi eq, %6, %8 : vector<64x8xi32>
    %10 = arith.extui %9 : vector<64x8xi1> to vector<64x8xi32>
    %11 = arith.sitofp %10 : vector<64x8xi32> to vector<64x8xf32>
    %12 = tpu.iota {dimensions = array<i32: 0>} : vector<96x8xi32>
    %c0_10 = arith.constant 0 : index
    %c0_11 = arith.constant 0 : index
    %13 = vector.load %arg2[%c0_10, %c0_11] : memref<1x8xi32, #tpu.memory_space<vmem>>, vector<1x8xi32>
    %14 = vector.broadcast %13 : vector<1x8xi32> to vector<96x8xi32>
    %15 = arith.cmpi eq, %12, %14 : vector<96x8xi32>
    %16 = arith.extui %15 : vector<96x8xi1> to vector<96x8xi32>
    %17 = arith.sitofp %16 : vector<96x8xi32> to vector<96x8xf32>
    %cst_12 = arith.constant dense<0.000000e+00> : vector<1x8xf32>
    %18 = tpu.matmul %2, %11, %cst_12 {dimension_numbers = #tpu.dot_dimension_numbers<[1], [0], [0], [1], [0, 0, 1, 1], [], []>} : vector<1x64xf32>, vector<64x8xf32>, vector<1x8xf32> -> vector<1x8xf32>
    %cst_13 = arith.constant dense<0.000000e+00> : vector<1x8xf32>
    %19 = tpu.matmul %5, %17, %cst_13 {dimension_numbers = #tpu.dot_dimension_numbers<[1], [0], [0], [1], [0, 0, 1, 1], [], []>} : vector<1x96xf32>, vector<96x8xf32>, vector<1x8xf32> -> vector<1x8xf32>
    %20 = arith.addf %18, %19 : vector<1x8xf32>
    %c0_14 = arith.constant 0 : index
    %21 = memref.load %arg7[%c0_14] : memref<1xf32, #tpu.memory_space<smem>>
    %22 = vector.broadcast %21 : f32 to vector<1x8xf32>
    %23 = arith.addf %20, %22 : vector<1x8xf32>
    %24 = arith.negf %23 : vector<1x8xf32>
    %25 = math.exp %24 : vector<1x8xf32>
    %cst_15 = arith.constant 1.000000e+00 : f32
    %26 = vector.broadcast %cst_15 : f32 to vector<1x8xf32>
    %27 = arith.addf %26, %25 : vector<1x8xf32>
    %28 = arith.divf %26, %27 : vector<1x8xf32>
    %c0_16 = arith.constant 0 : index
    %c0_17 = arith.constant 0 : index
    %29 = vector.load %arg8[%c0_16, %c0_17] : memref<1x8xf32, #tpu.memory_space<vmem>>, vector<1x8xf32>
    tpu.vector_store %arg8[%c0_16, %c0_17], %28 {strides = array<i32>} : memref<1x8xf32, #tpu.memory_space<vmem>>, vector<1x8xf32>,
    return
  }
  func.func @transform_0(%arg0: i32) -> (i32, i32) {
    %c0_i32 = arith.constant 0 : i32
    %c0_i32_0 = arith.constant 0 : i32
    return %c0_i32, %arg0 : i32, i32
  }
  func.func @transform_1(%arg0: i32) -> (i32, i32) {
    %c0_i32 = arith.constant 0 : i32
    %c0_i32_0 = arith.constant 0 : i32
    return %c0_i32, %arg0 : i32, i32
  }
  func.func @transform_2(%arg0: i32) -> (i32, i32) {
    %c0_i32 = arith.constant 0 : i32
    %c0_i32_0 = arith.constant 0 : i32
    %c0_i32_1 = arith.constant 0 : i32
    return %c0_i32, %c0_i32_0 : i32, i32
  }
  func.func @transform_3(%arg0: i32) -> (i32, i32) {
    %c0_i32 = arith.constant 0 : i32
    %c0_i32_0 = arith.constant 0 : i32
    %c0_i32_1 = arith.constant 0 : i32
    return %c0_i32, %c0_i32_0 : i32, i32
  }
  func.func @transform_4(%arg0: i32) -> (i32, i32) {
    %c0_i32 = arith.constant 0 : i32
    %c0_i32_0 = arith.constant 0 : i32
    %c0_i32_1 = arith.constant 0 : i32
    return %c0_i32, %c0_i32_0 : i32, i32
  }
  func.func @transform_5(%arg0: i32) -> (i32, i32) {
    %c0_i32 = arith.constant 0 : i32
    %c0_i32_0 = arith.constant 0 : i32
    %c0_i32_1 = arith.constant 0 : i32
    return %c0_i32, %c0_i32_0 : i32, i32
  }
  func.func @transform_6(%arg0: i32) -> i32 {
    %c0_i32 = arith.constant 0 : i32
    %c0_i32_0 = arith.constant 0 : i32
    return %c0_i32 : i32
  }
  func.func @transform_7(%arg0: i32) -> (i32, i32) {
    %c0_i32 = arith.constant 0 : i32
    %c0_i32_0 = arith.constant 0 : i32
    return %c0_i32, %arg0 : i32, i32
  }
}

</mosaic_0001>

<llo_original>
// kernel: tpu_custom_call.1
$region0: #{tpu_custom_call.1}
  #allocation0 [shape = 'u32[]', space=smem, size = 0x4, offset = 0x4, fixed_abs, tag = 'smem constant byte address 0x4 - core index']
  #allocation1 [shape = 'u32[144,128]{1,0:T(1,128)}', space=vmem, size = 0x12000, scoped, tag = 'internal scratch']
  #allocation2 [shape = 'f32[1]{0:T(128)S(6)}', space=smem, size = 0x200, scoped, tag = 'scoped memory for tpu_custom_call.1']
  %s0 = inlined_call_operand.vmem [shape: s32[1,8], index: 0, kind: input, shape index: {}]
  %s1 = inlined_call_operand.vmem [shape: s32[1,8], index: 1, kind: input, shape index: {}]
  %s2 = inlined_call_operand.vmem [shape: f32[64,32], index: 2, kind: input, shape index: {}]
  %s3 = inlined_call_operand.vmem [shape: f32[96,32], index: 3, kind: input, shape index: {}]
  %s4 = inlined_call_operand.vmem [shape: f32[1,32], index: 4, kind: input, shape index: {}]
  %s5 = inlined_call_operand.vmem [shape: f32[1,32], index: 5, kind: input, shape index: {}]
  %s6 = inlined_call_operand.<no memory space> [shape: f32[1], index: 6, kind: input, shape index: {}]
  %s7 = inlined_call_operand.hbm [shape: f32[1,8], index: 7, kind: output, shape index: {}]
  %s8 = sld [smem:[#allocation0]]
  $region38: #{tpu_custom_call.1} parent=0
    _
  %s10 = ssub.s32 1, %s8
  %s11 = scalar_select 0, %s10, %s8
  %12 = sst [smem:[#allocation2]] %s6
  $region1: #{tpu_custom_call.1} parent=0
    #allocation3 [shape = 'u8[512]{0}', space=vmem, size = 0x400, scoped, tag = 'output window, operand 0, single buffered']
    #allocation4 [shape = 's32[1]{0}', space=sflag, size = 0x4, scoped, tag = 'scoped memory for tpu_custom_call.1']
    %13 = vsyncpa [#allocation4], 0
    // Predicated region
    $region2: #{tpu_custom_call.1} parent=1 // pred_check
      _
    $region3: #{tpu_custom_call.1} parent=1 // pred_check_branch
      %15 = sbr.rel (0) target = $region5
    $region4: #{tpu_custom_call.1} parent=1 // pred_region
      _
    $region5: #{tpu_custom_call.1} parent=1 // pred_fallthru
      _
    // Predicated region
    $region6: #{tpu_custom_call.1} parent=1 // pred_check
      _
    $region7: #{tpu_custom_call.1} parent=1 // pred_check_branch
      %17 = sbr.rel (0) target = $region9
    $region8: #{tpu_custom_call.1} parent=1 // pred_region
      _
    $region9: #{tpu_custom_call.1} parent=1 // pred_fallthru
      _
    // Predicated region
    $region10: #{tpu_custom_call.1} parent=1 // pred_check
      _
    $region11: #{tpu_custom_call.1} parent=1 // pred_check_branch
      %19 = sbr.rel (0) target = $region13
    $region12: #{tpu_custom_call.1} parent=1 // pred_region
      _
    $region13: #{tpu_custom_call.1} parent=1 // pred_fallthru
      _
    // Predicated region
    $region14: #{tpu_custom_call.1} parent=1 // pred_check
      _
    $region15: #{tpu_custom_call.1} parent=1 // pred_check_branch
      %21 = sbr.rel (0) target = $region17
    $region16: #{tpu_custom_call.1} parent=1 // pred_region
      _
    $region17: #{tpu_custom_call.1} parent=1 // pred_fallthru
      _
    // Predicated region
    $region18: #{tpu_custom_call.1} parent=1 // pred_check
      _
    $region19: #{tpu_custom_call.1} parent=1 // pred_check_branch
      %23 = sbr.rel (0) target = $region21
    $region20: #{tpu_custom_call.1} parent=1 // pred_region
      _
    $region21: #{tpu_custom_call.1} parent=1 // pred_fallthru
      _
    // Predicated region
    $region22: #{tpu_custom_call.1} parent=1 // pred_check
      _
    $region23: #{tpu_custom_call.1} parent=1 // pred_check_branch
      %25 = sbr.rel (0) target = $region25
    $region24: #{tpu_custom_call.1} parent=1 // pred_region
      _
    $region25: #{tpu_custom_call.1} parent=1 // pred_fallthru
      _
    // Predicated region
    $region26: #{tpu_custom_call.1} parent=1 // pred_check
      _
    $region27: #{tpu_custom_call.1} parent=1 // pred_check_branch
      %27 = sbr.rel (0) target = $region29
    $region28: #{tpu_custom_call.1} parent=1 // pred_region
      _
    $region29: #{tpu_custom_call.1} parent=1 // pred_fallthru
      _
    %v28 = vld [vmem:[%s4] sm:$0x1]
    %v29 = vld [vmem:[%s2] sm:$0xff]
    %v30 = vld [vmem:[%s2 + $0x8] sm:$0xff]
    %v31 = vld [vmem:[%s2 + $0x10] sm:$0xff]
    %v32 = vld [vmem:[%s2 + $0x18] sm:$0xff]
    %v33 = vld [vmem:[%s2 + $0x20] sm:$0xff]
    %v34 = vld [vmem:[%s2 + $0x28] sm:$0xff]
    %v35 = vld [vmem:[%s2 + $0x30] sm:$0xff]
    %v36 = vld [vmem:[%s2 + $0x38] sm:$0xff]
    %vm37 = vcmask 261120
    %v39 = vsel %vm37, %v28, 0
    %v42 = vsel %vm37, %v29, 0
    %v45 = vsel %vm37, %v30, 0
    %v48 = vsel %vm37, %v31, 0
    %v51 = vsel %vm37, %v32, 0
    %v54 = vsel %vm37, %v33, 0
    %v57 = vsel %vm37, %v34, 0
    %v60 = vsel %vm37, %v35, 0
    %v63 = vsel %vm37, %v36, 0
    %65 = vmatprep.subr.mxu0 0.0
    %66 = vmatpush1.xpose.msra.mxu0 %v42
    %67 = vmatprep.subr.mxu0 0.0
    %68 = vmatpush1.xpose.msra.mxu0 %v45
    %69 = vmatprep.subr.mxu0 0.0
    %70 = vmatpush1.xpose.msra.mxu0 %v48
    %71 = vmatprep.subr.mxu0 0.0
    %72 = vmatpush1.xpose.msra.mxu0 %v51
    %73 = vmatprep.subr.mxu0 0.0
    %74 = vmatpush1.xpose.msra.mxu0 %v54
    %75 = vmatprep.subr.mxu0 0.0
    %76 = vmatpush1.xpose.msra.mxu0 %v57
    %77 = vmatprep.subr.mxu0 0.0
    %78 = vmatpush1.xpose.msra.mxu0 %v60
    %79 = vmatprep.subr.mxu0 0.0
    %80 = vmatpush1.xpose.msra.mxu0 %v63
    %81 = vmatprep.subr.mxu0 0.0
    %82 = vmatpush1.xpose.msra.mxu0 0.0
    %83 = vmatprep.subr.mxu0 0.0
    %84 = vmatpush1.xpose.msra.mxu0 0.0
    %85 = vmatprep.subr.mxu0 0.0
    %86 = vmatpush1.xpose.msra.mxu0 0.0
    %87 = vmatprep.subr.mxu0 0.0
    %88 = vmatpush1.xpose.msra.mxu0 0.0
    %89 = vmatprep.subr.mxu0 0.0
    %90 = vmatpush1.xpose.msra.mxu0 0.0
    %91 = vmatprep.subr.mxu0 0.0
    %92 = vmatpush1.xpose.msra.mxu0 0.0
    %93 = vmatprep.subr.mxu0 0.0
    %94 = vmatpush1.xpose.msra.mxu0 0.0
    %95 = vmatprep.subr.mxu0 0.0
    %96 = vmatpush1.xpose.msra.mxu0 0.0
    %97 = vmatprep.subr.mxu0 0.0
    %98 = vmatpush1.xpose.msra.mxu0 0.0
    %99 = vmatprep.subr.mxu0 0.0
    %100 = vmatpush1.xpose.msra.mxu0 0.0
    %101 = vmatprep.subr.mxu0 0.0
    %102 = vmatpush1.xpose.msra.mxu0 0.0
    %103 = vmatprep.subr.mxu0 0.0
    %104 = vmatpush1.xpose.msra.mxu0 0.0
    %105 = vmatprep.subr.mxu0 0.0
    %106 = vmatpush1.xpose.msra.mxu0 0.0
    %107 = vmatprep.subr.mxu0 0.0
    %108 = vmatpush1.xpose.msra.mxu0 0.0
    %109 = vmatprep.subr.mxu0 0.0
    %110 = vmatpush1.xpose.msra.mxu0 0.0
    %111 = vmatprep.subr.mxu0 0.0
    %112 = vmatpush1.xpose.msra.mxu0 0.0
    %113 = vmatprep.subr.mxu0 0.0
    %114 = vmatpush1.xpose.msra.mxu0 0.0
    %115 = vmatprep.subr.mxu0 0.0
    %116 = vmatpush1.xpose.msra.mxu0 0.0
    %117 = vmatprep.subr.mxu0 0.0
    %118 = vmatpush1.xpose.msra.mxu0 0.0
    %119 = vmatprep.subr.mxu0 0.0
    %120 = vmatpush1.xpose.msra.mxu0 0.0
    %121 = vmatprep.subr.mxu0 0.0
    %122 = vmatpush1.xpose.msra.mxu0 0.0
    %123 = vmatprep.subr.mxu0 0.0
    %124 = vmatpush1.xpose.msra.mxu0 0.0
    %125 = vmatprep.subr.mxu0 0.0
    %126 = vmatpush1.xpose.msra.mxu0 0.0
    %127 = vmatprep.subr.mxu0 0.0
    %128 = vmatpush1.xpose.msra.mxu0 0.0
    %129 = vmatprep.mubr.f32.mxu0 0.0
    %130 = vmatmul.mubr.f32.gmra.mrb[0].mxu0 %v39
    %v131 = vpop.f32.mrb[0].mxu0
    %v132 = vadd.f32 0.0, %v131
    %v133 = vpop.f32.mrb[0].mxu0
    %134 = vdwg.mxu0
    %v135 = vld [vmem:[%s5] sm:$0x1]
    %v136 = vld [vmem:[%s3] sm:$0xff]
    %v137 = vld [vmem:[%s3 + $0x8] sm:$0xff]
    %v138 = vld [vmem:[%s3 + $0x10] sm:$0xff]
    %v139 = vld [vmem:[%s3 + $0x18] sm:$0xff]
    %v140 = vld [vmem:[%s3 + $0x20] sm:$0xff]
    %v141 = vld [vmem:[%s3 + $0x28] sm:$0xff]
    %v142 = vld [vmem:[%s3 + $0x30] sm:$0xff]
    %v143 = vld [vmem:[%s3 + $0x38] sm:$0xff]
    %v144 = vld [vmem:[%s3 + $0x40] sm:$0xff]
    %v145 = vld [vmem:[%s3 + $0x48] sm:$0xff]
    %v146 = vld [vmem:[%s3 + $0x50] sm:$0xff]
    %v147 = vld [vmem:[%s3 + $0x58] sm:$0xff]
    %v149 = vsel %vm37, %v135, 0
    %v152 = vsel %vm37, %v136, 0
    %v155 = vsel %vm37, %v137, 0
    %v158 = vsel %vm37, %v138, 0
    %v161 = vsel %vm37, %v139, 0
    %v164 = vsel %vm37, %v140, 0
    %v167 = vsel %vm37, %v141, 0
    %v170 = vsel %vm37, %v142, 0
    %v173 = vsel %vm37, %v143, 0
    %v176 = vsel %vm37, %v144, 0
    %v179 = vsel %vm37, %v145, 0
    %v182 = vsel %vm37, %v146, 0
    %v185 = vsel %vm37, %v147, 0
    %187 = vmatprep.subr.mxu0 0.0
    %188 = vmatpush1.xpose.msra.mxu0 %v152
    %189 = vmatprep.subr.mxu0 0.0
    %190 = vmatpush1.xpose.msra.mxu0 %v155
    %191 = vmatprep.subr.mxu0 0.0
    %192 = vmatpush1.xpose.msra.mxu0 %v158
    %193 = vmatprep.subr.mxu0 0.0
    %194 = vmatpush1.xpose.msra.mxu0 %v161
    %195 = vmatprep.subr.mxu0 0.0
    %196 = vmatpush1.xpose.msra.mxu0 %v164
    %197 = vmatprep.subr.mxu0 0.0
    %198 = vmatpush1.xpose.msra.mxu0 %v167
    %199 = vmatprep.subr.mxu0 0.0
    %200 = vmatpush1.xpose.msra.mxu0 %v170
    %201 = vmatprep.subr.mxu0 0.0
    %202 = vmatpush1.xpose.msra.mxu0 %v173
    %203 = vmatprep.subr.mxu0 0.0
    %204 = vmatpush1.xpose.msra.mxu0 %v176
    %205 = vmatprep.subr.mxu0 0.0
    %206 = vmatpush1.xpose.msra.mxu0 %v179
    %207 = vmatprep.subr.mxu0 0.0
    %208 = vmatpush1.xpose.msra.mxu0 %v182
    %209 = vmatprep.subr.mxu0 0.0
    %210 = vmatpush1.xpose.msra.mxu0 %v185
    %211 = vmatprep.subr.mxu0 0.0
    %212 = vmatpush1.xpose.msra.mxu0 0.0
    %213 = vmatprep.subr.mxu0 0.0
    %214 = vmatpush1.xpose.msra.mxu0 0.0
    %215 = vmatprep.subr.mxu0 0.0
    %216 = vmatpush1.xpose.msra.mxu0 0.0
    %217 = vmatprep.subr.mxu0 0.0
    %218 = vmatpush1.xpose.msra.mxu0 0.0
    %219 = vmatprep.subr.mxu0 0.0
    %220 = vmatpush1.xpose.msra.mxu0 0.0
    %221 = vmatprep.subr.mxu0 0.0
    %222 = vmatpush1.xpose.msra.mxu0 0.0
    %223 = vmatprep.subr.mxu0 0.0
    %224 = vmatpush1.xpose.msra.mxu0 0.0
    %225 = vmatprep.subr.mxu0 0.0
    %226 = vmatpush1.xpose.msra.mxu0 0.0
    %227 = vmatprep.subr.mxu0 0.0
    %228 = vmatpush1.xpose.msra.mxu0 0.0
    %229 = vmatprep.subr.mxu0 0.0
    %230 = vmatpush1.xpose.msra.mxu0 0.0
    %231 = vmatprep.subr.mxu0 0.0
    %232 = vmatpush1.xpose.msra.mxu0 0.0
    %233 = vmatprep.subr.mxu0 0.0
    %234 = vmatpush1.xpose.msra.mxu0 0.0
    %235 = vmatprep.subr.mxu0 0.0
    %236 = vmatpush1.xpose.msra.mxu0 0.0
    %237 = vmatprep.subr.mxu0 0.0
    %238 = vmatpush1.xpose.msra.mxu0 0.0
    %239 = vmatprep.subr.mxu0 0.0
    %240 = vmatpush1.xpose.msra.mxu0 0.0
    %241 = vmatprep.subr.mxu0 0.0
    %242 = vmatpush1.xpose.msra.mxu0 0.0
    %243 = vmatprep.subr.mxu0 0.0
    %244 = vmatpush1.xpose.msra.mxu0 0.0
    %245 = vmatprep.subr.mxu0 0.0
    %246 = vmatpush1.xpose.msra.mxu0 0.0
    %247 = vmatprep.subr.mxu0 0.0
    %248 = vmatpush1.xpose.msra.mxu0 0.0
    %249 = vmatprep.subr.mxu0 0.0
    %250 = vmatpush1.xpose.msra.mxu0 0.0
    %251 = vmatprep.mubr.f32.mxu0 0.0
    %252 = vmatmul.mubr.f32.gmra.mrb[0].mxu0 %v149
    %v253 = vpop.f32.mrb[0].mxu0
    %v254 = vadd.f32 0.0, %v253
    %v255 = vpop.f32.mrb[0].mxu0
    %256 = vdwg.mxu0
    %v257 = vlaneseq
    %v258 = vshrl.u32 %v257, 7
    %v259 = vadd.s32 %v258, 8
    %v260 = vadd.s32 %v258, 16
    %v261 = vadd.s32 %v258, 24
    %v262 = vadd.s32 %v258, 32
    %v263 = vadd.s32 %v258, 40
    %v264 = vadd.s32 %v258, 48
    %v265 = vadd.s32 %v258, 56
    %v266 = vld [vmem:[%s0] sm:$0x1]
    %v267 = vlaneseq
    %v268 = vshrl.u32 %v267, 7
    %v269 = vsub.s32 0, %v268
    %v270 = vrot.slane %v266, %v269
    %vm271 = vcmp.eq.s32.totalorder %v258, %v270
    %vm272 = vcmp.eq.s32.totalorder %v259, %v270
    %vm273 = vcmp.eq.s32.totalorder %v260, %v270
    %vm274 = vcmp.eq.s32.totalorder %v261, %v270
    %vm275 = vcmp.eq.s32.totalorder %v262, %v270
    %vm276 = vcmp.eq.s32.totalorder %v263, %v270
    %vm277 = vcmp.eq.s32.totalorder %v264, %v270
    %vm278 = vcmp.eq.s32.totalorder %v265, %v270
    %v279 = vsel %vm271, 1, 0
    %v280 = vsel %vm272, 1, 0
    %v281 = vsel %vm273, 1, 0
    %v282 = vsel %vm274, 1, 0
    %v283 = vsel %vm275, 1, 0
    %v284 = vsel %vm276, 1, 0
    %v285 = vsel %vm277, 1, 0
    %v286 = vsel %vm278, 1, 0
    %v287 = vcvt.s32.f32 %v279
    %v288 = vcvt.s32.f32 %v280
    %v289 = vcvt.s32.f32 %v281
    %v290 = vcvt.s32.f32 %v282
    %v291 = vcvt.s32.f32 %v283
    %v292 = vcvt.s32.f32 %v284
    %v293 = vcvt.s32.f32 %v285
    %v294 = vcvt.s32.f32 %v286
    %v295 = vadd.s32 %v258, 64
    %v296 = vadd.s32 %v258, 72
    %v297 = vadd.s32 %v258, 80
    %v298 = vadd.s32 %v258, 88
    %v299 = vld [vmem:[%s1] sm:$0x1]
    %v300 = vlaneseq
    %v301 = vshrl.u32 %v300, 7
    %v302 = vsub.s32 0, %v301
    %v303 = vrot.slane %v299, %v302
    %vm304 = vcmp.eq.s32.totalorder %v258, %v303
    %vm305 = vcmp.eq.s32.totalorder %v259, %v303
    %vm306 = vcmp.eq.s32.totalorder %v260, %v303
    %vm307 = vcmp.eq.s32.totalorder %v261, %v303
    %vm308 = vcmp.eq.s32.totalorder %v262, %v303
    %vm309 = vcmp.eq.s32.totalorder %v263, %v303
    %vm310 = vcmp.eq.s32.totalorder %v264, %v303
    %vm311 = vcmp.eq.s32.totalorder %v265, %v303
    %vm312 = vcmp.eq.s32.totalorder %v295, %v303
    %vm313 = vcmp.eq.s32.totalorder %v296, %v303
    %vm314 = vcmp.eq.s32.totalorder %v297, %v303
    %vm315 = vcmp.eq.s32.totalorder %v298, %v303
    %v316 = vsel %vm304, 1, 0
    %v317 = vsel %vm305, 1, 0
    %v318 = vsel %vm306, 1, 0
    %v319 = vsel %vm307, 1, 0
    %v320 = vsel %vm308, 1, 0
    %v321 = vsel %vm309, 1, 0
    %v322 = vsel %vm310, 1, 0
    %v323 = vsel %vm311, 1, 0
    %v324 = vsel %vm312, 1, 0
    %v325 = vsel %vm313, 1, 0
    %v326 = vsel %vm314, 1, 0
    %v327 = vsel %vm315, 1, 0
    %v328 = vcvt.s32.f32 %v316
    %v329 = vcvt.s32.f32 %v317
    %v330 = vcvt.s32.f32 %v318
    %v331 = vcvt.s32.f32 %v319
    %v332 = vcvt.s32.f32 %v320
    %v333 = vcvt.s32.f32 %v321
    %v334 = vcvt.s32.f32 %v322
    %v335 = vcvt.s32.f32 %v323
    %v336 = vcvt.s32.f32 %v324
    %v337 = vcvt.s32.f32 %v325
    %v338 = vcvt.s32.f32 %v326
    %v339 = vcvt.s32.f32 %v327
    %vm340 = vcmask 785408
    %v342 = vsel %vm340, %v254, 0
    %344 = vmatprep.subr.mxu0 0.0
    %345 = vmatpush1.msra.mxu0 %v328
    %346 = vmatprep.subr.mxu0 0.0
    %347 = vmatpush1.msra.mxu0 %v329
    %348 = vmatprep.subr.mxu0 0.0
    %349 = vmatpush1.msra.mxu0 %v330
    %350 = vmatprep.subr.mxu0 0.0
    %351 = vmatpush1.msra.mxu0 %v331
    %352 = vmatprep.subr.mxu0 0.0
    %353 = vmatpush1.msra.mxu0 %v332
    %354 = vmatprep.subr.mxu0 0.0
    %355 = vmatpush1.msra.mxu0 %v333
    %356 = vmatprep.subr.mxu0 0.0
    %357 = vmatpush1.msra.mxu0 %v334
    %358 = vmatprep.subr.mxu0 0.0
    %359 = vmatpush1.msra.mxu0 %v335
    %360 = vmatprep.subr.mxu0 0.0
    %361 = vmatpush1.msra.mxu0 %v336
    %362 = vmatprep.subr.mxu0 0.0
    %363 = vmatpush1.msra.mxu0 %v337
    %364 = vmatprep.subr.mxu0 0.0
    %365 = vmatpush1.msra.mxu0 %v338
    %366 = vmatprep.subr.mxu0 0.0
    %367 = vmatpush1.msra.mxu0 %v339
    %368 = vmatprep.subr.mxu0 0.0
    %369 = vmatpush1.msra.mxu0 0.0
    %370 = vmatprep.subr.mxu0 0.0
    %371 = vmatpush1.msra.mxu0 0.0
    %372 = vmatprep.subr.mxu0 0.0
    %373 = vmatpush1.msra.mxu0 0.0
    %374 = vmatprep.subr.mxu0 0.0
    %375 = vmatpush1.msra.mxu0 0.0
    %376 = vmatprep.subr.mxu0 0.0
    %377 = vmatpush1.msra.mxu0 0.0
    %378 = vmatprep.subr.mxu0 0.0
    %379 = vmatpush1.msra.mxu0 0.0
    %380 = vmatprep.subr.mxu0 0.0
    %381 = vmatpush1.msra.mxu0 0.0
    %382 = vmatprep.subr.mxu0 0.0
    %383 = vmatpush1.msra.mxu0 0.0
    %384 = vmatprep.subr.mxu0 0.0
    %385 = vmatpush1.msra.mxu0 0.0
    %386 = vmatprep.subr.mxu0 0.0
    %387 = vmatpush1.msra.mxu0 0.0
    %388 = vmatprep.subr.mxu0 0.0
    %389 = vmatpush1.msra.mxu0 0.0
    %390 = vmatprep.subr.mxu0 0.0
    %391 = vmatpush1.msra.mxu0 0.0
    %392 = vmatprep.subr.mxu0 0.0
    %393 = vmatpush1.msra.mxu0 0.0
    %394 = vmatprep.subr.mxu0 0.0
    %395 = vmatpush1.msra.mxu0 0.0
    %396 = vmatprep.subr.mxu0 0.0
    %397 = vmatpush1.msra.mxu0 0.0
    %398 = vmatprep.subr.mxu0 0.0
    %399 = vmatpush1.msra.mxu0 0.0
    %400 = vmatprep.subr.mxu0 0.0
    %401 = vmatpush1.msra.mxu0 0.0
    %402 = vmatprep.subr.mxu0 0.0
    %403 = vmatpush1.msra.mxu0 0.0
    %404 = vmatprep.subr.mxu0 0.0
    %405 = vmatpush1.msra.mxu0 0.0
    %406 = vmatprep.subr.mxu0 0.0
    %407 = vmatpush1.msra.mxu0 0.0
    %408 = vmatprep.mubr.f32.mxu0 0.0
    %409 = vmatmul.mubr.f32.gmra.mrb[0].mxu0 %v342
    %v410 = vpop.f32.mrb[0].mxu0
    %v411 = vadd.f32 0.0, %v410
    %v412 = vpop.f32.mrb[0].mxu0
    %413 = vdwg.mxu0
    %vm414 = vcmask 523264
    %v416 = vsel %vm414, %v132, 0
    %418 = vmatprep.subr.mxu0 0.0
    %419 = vmatpush1.msra.mxu0 %v287
    %420 = vmatprep.subr.mxu0 0.0
    %421 = vmatpush1.msra.mxu0 %v288
    %422 = vmatprep.subr.mxu0 0.0
    %423 = vmatpush1.msra.mxu0 %v289
    %424 = vmatprep.subr.mxu0 0.0
    %425 = vmatpush1.msra.mxu0 %v290
    %426 = vmatprep.subr.mxu0 0.0
    %427 = vmatpush1.msra.mxu0 %v291
    %428 = vmatprep.subr.mxu0 0.0
    %429 = vmatpush1.msra.mxu0 %v292
    %430 = vmatprep.subr.mxu0 0.0
    %431 = vmatpush1.msra.mxu0 %v293
    %432 = vmatprep.subr.mxu0 0.0
    %433 = vmatpush1.msra.mxu0 %v294
    %434 = vmatprep.subr.mxu0 0.0
    %435 = vmatpush1.msra.mxu0 0.0
    %436 = vmatprep.subr.mxu0 0.0
    %437 = vmatpush1.msra.mxu0 0.0
    %438 = vmatprep.subr.mxu0 0.0
    %439 = vmatpush1.msra.mxu0 0.0
    %440 = vmatprep.subr.mxu0 0.0
    %441 = vmatpush1.msra.mxu0 0.0
    %442 = vmatprep.subr.mxu0 0.0
    %443 = vmatpush1.msra.mxu0 0.0
    %444 = vmatprep.subr.mxu0 0.0
    %445 = vmatpush1.msra.mxu0 0.0
    %446 = vmatprep.subr.mxu0 0.0
    %447 = vmatpush1.msra.mxu0 0.0
    %448 = vmatprep.subr.mxu0 0.0
    %449 = vmatpush1.msra.mxu0 0.0
    %450 = vmatprep.subr.mxu0 0.0
    %451 = vmatpush1.msra.mxu0 0.0
    %452 = vmatprep.subr.mxu0 0.0
    %453 = vmatpush1.msra.mxu0 0.0
    %454 = vmatprep.subr.mxu0 0.0
    %455 = vmatpush1.msra.mxu0 0.0
    %456 = vmatprep.subr.mxu0 0.0
    %457 = vmatpush1.msra.mxu0 0.0
    %458 = vmatprep.subr.mxu0 0.0
    %459 = vmatpush1.msra.mxu0 0.0
    %460 = vmatprep.subr.mxu0 0.0
    %461 = vmatpush1.msra.mxu0 0.0
    %462 = vmatprep.subr.mxu0 0.0
    %463 = vmatpush1.msra.mxu0 0.0
    %464 = vmatprep.subr.mxu0 0.0
    %465 = vmatpush1.msra.mxu0 0.0
    %466 = vmatprep.subr.mxu0 0.0
    %467 = vmatpush1.msra.mxu0 0.0
    %468 = vmatprep.subr.mxu0 0.0
    %469 = vmatpush1.msra.mxu0 0.0
    %470 = vmatprep.subr.mxu0 0.0
    %471 = vmatpush1.msra.mxu0 0.0
    %472 = vmatprep.subr.mxu0 0.0
    %473 = vmatpush1.msra.mxu0 0.0
    %474 = vmatprep.subr.mxu0 0.0
    %475 = vmatpush1.msra.mxu0 0.0
    %476 = vmatprep.subr.mxu0 0.0
    %477 = vmatpush1.msra.mxu0 0.0
    %478 = vmatprep.subr.mxu0 0.0
    %479 = vmatpush1.msra.mxu0 0.0
    %480 = vmatprep.subr.mxu0 0.0
    %481 = vmatpush1.msra.mxu0 0.0
    %482 = vmatprep.mubr.f32.mxu0 0.0
    %483 = vmatmul.mubr.f32.gmra.mrb[0].mxu0 %v416
    %v484 = vpop.f32.mrb[0].mxu0
    %v485 = vadd.f32 %v411, %v484
    %v486 = vpop.f32.mrb[0].mxu0
    %487 = vdwg.mxu0
    %s488 = sld [smem:[#allocation2]]
    %v489 = vstv %s488
    %v490 = vadd.f32 %v485, %v489
    %v491 = vxor.u32 %v490, 2147483648
    %v492 = vmul.f32 %v491, 1.442695
    %v493 = vpow.pop %v492
    %v494 = vadd.f32 %v493, 1.0
    %v495 = vrcp.pop %v494
    %v496 = vmul.f32 1.0, %v495
    %vm497 = vcmask 57344
    %498 = vst.msk [vmem:[#allocation3] sm:$0x1] %vm497, %v496
    // Predicated region
    $region30: #{tpu_custom_call.1} parent=1 // pred_check
      _
    $region31: #{tpu_custom_call.1} parent=1 // pred_check_branch
      %500 = sbr.rel (0) target = $region33
    $region32: #{tpu_custom_call.1} parent=1 // pred_region
      %s502 = ssub.s32 16, 16
      %503 = vsyncadd [#allocation4], %s502
      %s505 = sshll.u32 [#allocation3], 4
      %s506 = int_to_ptr.vmem [resolvable:$true] %s505
      %508 = dma.vmem_to_hbm [thread:$0]  %s506, 16, %s7, [#allocation4]
    $region33: #{tpu_custom_call.1} parent=1 // pred_fallthru
      _
    // Predicated region
    $region34: #{tpu_custom_call.1} parent=1 // pred_check
      _
    $region35: #{tpu_custom_call.1} parent=1 // pred_check_branch
      %510 = sbr.rel (0) target = $region37
    $region36: #{tpu_custom_call.1} parent=1 // pred_region
      %511 = dma.done [#allocation4], 16
    $region37: #{tpu_custom_call.1} parent=1 // pred_fallthru
      _
    %512 = vsyncpa [#allocation4], 1

</llo_original>
